<compile_context>
chip_gen: v5e
topology: v5e:2x2
jax: 0.10.0
libtpu: 0.0.40
codegen_flags: <defaults>
</compile_context>

<pallas_src>
import numpy as np

import jax
import jax.numpy as jnp
from jax.experimental import pallas as pl
from jax.experimental.pallas import tpu as pltpu


def _upsample_conv_kernel(x_ref, bmat_ref, tt_ref, brow_ref, o_ref):
    # x_ref   : (1, H, C*W)      batch element n, rows y, channels folded into lanes
    # bmat_ref: (C*W, 3*C*W2)    weight-folded horizontal scatter (resident in VMEM)
    # tt_ref  : (th2, 3*H)       row-block slice of the vertical scatter (dy along K)
    # brow_ref: (1, C*W2)        bias replicated per output-channel lane block
    # o_ref   : (1, th2, C*W2)   output rows Y of this block, columns ordered (co, X)
    cw2 = brow_ref.shape[1]

    # Horizontal pass + channel mix + dx taps + conv weights in ONE MXU matmul (K = C*W):
    #   mix[y, (dy, co, X)] = sum_{ci, dx} w[co, ci, dy, dx] * (x[ci] @ S[dx])[y, X]
    mix = jnp.dot(x_ref[0], bmat_ref[...], preferred_element_type=jnp.float32)

    # Move the three dy tap blocks from lanes to the contraction (sublane) axis.  Slices
    # are lane-tile aligned whenever C*W2 is a multiple of 128 (true at the test size) and
    # the concat stitches 8-row-aligned slabs, so this is a cheap re-tiling, not a shuffle.
    mixr = jnp.concatenate(
        [mix[:, 0:cw2], mix[:, cw2:2 * cw2], mix[:, 2 * cw2:3 * cw2]], axis=0)

    # Vertical scatter (row upsample + pad + dy taps) in ONE MXU matmul (K = 3*H).
    out = jnp.dot(tt_ref[...], mixr, preferred_element_type=jnp.float32)

    # Bias (broadcast over rows) and a single lane-dense store.
    o_ref[0] = (out + brow_ref[...].astype(jnp.float32)).astype(o_ref.dtype)


def _scatter_mats(dim):
    """(3, dim, 2*dim) 0/1 matrices folding nearest-2x upsample + pad=1 + conv tap d.

    M[d][c, X] = 1  iff  1 <= X + d <= 2*dim  and  (X + d - 1) // 2 == c
    (output position X with tap offset d reads original index c; 0 in the padding).
    """
    m = np.zeros((3, dim, 2 * dim), np.float32)
    for d in range(3):
        for x_out in range(2 * dim):
            p = x_out + d
            if 1 <= p <= 2 * dim:
                m[d, (p - 1) // 2, x_out] = 1.0
    return m


def _vmem_capacity_bytes():
    try:
        return int(pltpu.get_tpu_info().vmem_capacity_bytes)
    except Exception:
        return 64 * 1024 * 1024  # conservative fallback = v7x physical VMEM


def _pick_row_block(h2, h, w, c, itemsize, budget_bytes):
    """Largest output-row block th2 (multiple of the dtype sublane granule, divisor of 2H)
    whose TOTAL double-buffered VMEM footprint fits the per-chip budget."""
    granule = {4: 8, 2: 16, 1: 32}.get(itemsize, 8)
    w2 = 2 * w
    cw, cw2 = c * w, c * w2

    def vmem_bytes(th2):
        x_blk = h * cw * itemsize            # (1, H, C*W)
        bmat = cw * 3 * cw2 * itemsize       # (C*W, 3*C*W2)   constant index -> resident
        tt_blk = th2 * 3 * h * itemsize      # (th2, 3*H)
        brow = cw2 * itemsize                # (1, C*W2)
        out_blk = th2 * cw2 * itemsize       # (1, th2, C*W2)
        return 2 * (x_blk + bmat + tt_blk + brow + out_blk)  # pipeline double-buffers

    cands = [d for d in range(granule, h2 + 1, granule) if h2 % d == 0]
    if not cands:
        return h2  # tiny image: single full-height block (full-dim exemption applies)
    for th2 in sorted(cands, reverse=True):
        if vmem_bytes(th2) <= budget_bytes:
            return th2
    return cands[0]


@jax.jit
def upsample_forward(x_nchw, weight, bias):
    """UpSample.forward: F.interpolate(scale=2, nearest) then Conv2d(C, C, 3, pad=1).

    x_nchw : (N, C, H, W)   weight : (C, C, 3, 3) PyTorch OIHW   bias : (C,)
    returns: (N, C, 2H, 2W)
    """
    N, C, H, W = x_nchw.shape
    H2, W2 = 2 * H, 2 * W
    CW, CW2 = C * W, C * W2
    dt = x_nchw.dtype
    itemsize = jnp.dtype(dt).itemsize

    # TODO(synk): B_mat is O(C^2 * W^2); for large channel counts, tile co/ci over extra
    # grid axes (accumulating in VMEM scratch) instead of one dense weight-folded operand.

    # Constant 0/1 scatter matrices folding upsample + zero-pad + tap offsets.
    s = _scatter_mats(W)                                           # (3, W, W2)
    r = _scatter_mats(H)                                           # (3, H, H2)
    tt_cat = jnp.asarray(
        np.concatenate([r[d].T for d in range(3)], axis=1), dtype=dt)   # (H2, 3*H)

    # Fold the conv weights into the horizontal scatter (weight-sized wrapper work only):
    #   B_mat[ci*W + c, (dy*C + co)*W2 + X] = sum_dx w[co, ci, dy, dx] * S[dx][c, X]
    bmat = jnp.einsum('oiyd,dcx->icyox', weight.astype(dt),
                      jnp.asarray(s, dtype=dt)).reshape(CW, 3 * CW2)

    # Bias replicated per output-channel lane block of the lane-dense output layout.
    b_row = jnp.repeat(bias.astype(dt), W2).reshape(1, CW2)

    # Input presented as (N, H, C*W): channels ride the MXU contraction dim (free reshape
    # plus one tiny XLA transpose — layout plumbing done once, outside the grid loop).
    xr = x_nchw.transpose(0, 2, 1, 3).reshape(N, H, CW)

    budget = (_vmem_capacity_bytes() * 3) // 4
    th2 = _pick_row_block(H2, H, W, C, itemsize, budget)
    rb = H2 // th2

    out_flat = pl.pallas_call(
        _upsample_conv_kernel,
        out_shape=jax.ShapeDtypeStruct((N, H2, CW2), dt),
        grid_spec=pltpu.PrefetchScalarGridSpec(
            num_scalar_prefetch=0,
            grid=(N, rb),
            in_specs=[
                # Input rows: block index changes only with n -> no re-DMA across r.
                pl.BlockSpec((1, H, CW), lambda n, r_: (n, 0, 0)),
                # Weight-folded scatter + bias: constant index maps -> resident in VMEM.
                pl.BlockSpec((CW, 3 * CW2), lambda n, r_: (0, 0)),
                pl.BlockSpec((th2, 3 * H), lambda n, r_: (r_, 0)),
                pl.BlockSpec((1, CW2), lambda n, r_: (0, 0)),
            ],
            out_specs=pl.BlockSpec((1, th2, CW2), lambda n, r_: (n, r_, 0)),
        ),
        compiler_params=pltpu.CompilerParams(
            dimension_semantics=("parallel", "parallel"),
            vmem_limit_bytes=int(budget),
        ),
    )(xr, bmat, tt_cat, b_row)

    # Layout plumbing back to NCHW (free reshape + one small XLA transpose).
    return out_flat.reshape(N, H2, C, W2).transpose(0, 2, 1, 3)


def _reference(x_nchw, weight, bias):
    # Pure-JAX reference matching the PyTorch module semantics (NCHW).
    x = jnp.repeat(jnp.repeat(x_nchw, 2, axis=2), 2, axis=3)
    out = jax.lax.conv_general_dilated(
        x, weight, window_strides=(1, 1), padding=((1, 1), (1, 1)),
        dimension_numbers=("NCHW", "OIHW", "NCHW"))
    return out + bias[None, :, None, None]


if __name__ == "__main__":
    key = jax.random.PRNGKey(0)
    k_x, k_w, k_b = jax.random.split(key, 3)

    N, C, H, W = 2, 4, 16, 16
    x = jax.random.normal(k_x, (N, C, H, W), dtype=jnp.float32)

    # Deterministic Conv2d(C, C, 3) params (PyTorch-style uniform init bounds).
    fan_in = C * 3 * 3
    bound = 1.0 / (fan_in ** 0.5)
    weight = jax.random.uniform(k_w, (C, C, 3, 3), minval=-bound, maxval=bound,
                                dtype=jnp.float32)
    bias = jax.random.uniform(k_b, (C,), minval=-bound, maxval=bound,
                              dtype=jnp.float32)

    out = jax.block_until_ready(upsample_forward(x, weight, bias))
    ref = jax.block_until_ready(_reference(x, weight, bias))

    assert out.shape == (N, C, 2 * H, 2 * W), out.shape
    assert jnp.allclose(out, ref, atol=1e-2, rtol=1e-2), float(
        jnp.max(jnp.abs(out - ref)))
    print("KERNEL_OK")
</pallas_src>

<mosaic_0001>
module attributes {stable_mosaic.version = 11 : i64} {
  func.func @_upsample_conv_kernel(%arg0: i32, %arg1: i32, %arg2: memref<1x16x64xf32, #tpu.memory_space<vmem>>, %arg3: memref<64x384xf32, #tpu.memory_space<vmem>>, %arg4: memref<32x48xf32, #tpu.memory_space<vmem>>, %arg5: memref<1x128xf32, #tpu.memory_space<vmem>>, %arg6: memref<1x32x128xf32, #tpu.memory_space<vmem>>) attributes {dimension_semantics = [#tpu.dimension_semantics<parallel>, #tpu.dimension_semantics<parallel>], iteration_bounds = array<i64: 2, 1>, scalar_prefetch = 0 : i64, scratch_operands = 0 : i64, tpu.core_type = #tpu.core_type<tc>, window_params = [{transform_indices = @transform_0, window_bounds = array<i64: 1, 16, 64>}, {pipeline_mode = #tpu.pipeline_mode<synchronous>, transform_indices = @transform_1, window_bounds = array<i64: 64, 384>}, {transform_indices = @transform_2, window_bounds = array<i64: 32, 48>}, {pipeline_mode = #tpu.pipeline_mode<synchronous>, transform_indices = @transform_3, window_bounds = array<i64: 1, 128>}, {transform_indices = @transform_4, window_bounds = array<i64: 1, 32, 128>}]} {
    %c0 = arith.constant 0 : index
    %c0_0 = arith.constant 0 : index
    %c0_1 = arith.constant 0 : index
    %0 = vector.load %arg2[%c0, %c0_0, %c0_1] : memref<1x16x64xf32, #tpu.memory_space<vmem>>, vector<1x16x64xf32>
    %1 = vector.shape_cast %0 : vector<1x16x64xf32> to vector<16x64xf32>
    %c0_2 = arith.constant 0 : index
    %c0_3 = arith.constant 0 : index
    %2 = vector.load %arg3[%c0_2, %c0_3] : memref<64x384xf32, #tpu.memory_space<vmem>>, vector<64x384xf32>
    %cst = arith.constant dense<0.000000e+00> : vector<16x384xf32>
    %3 = tpu.matmul %1, %2, %cst {dimension_numbers = #tpu.dot_dimension_numbers<[1], [0], [0], [1], [0, 0, 1, 1], [], []>} : vector<16x64xf32>, vector<64x384xf32>, vector<16x384xf32> -> vector<16x384xf32>
    %4 = vector.extract_strided_slice %3 {offsets = [0, 0], sizes = [16, 128], strides = [1, 1]} : vector<16x384xf32> to vector<16x128xf32>
    %5 = vector.extract_strided_slice %3 {offsets = [0, 128], sizes = [16, 128], strides = [1, 1]} : vector<16x384xf32> to vector<16x128xf32>
    %6 = vector.extract_strided_slice %3 {offsets = [0, 256], sizes = [16, 128], strides = [1, 1]} : vector<16x384xf32> to vector<16x128xf32>
    %7 = tpu.concatenate %4, %5, %6 in 0 : vector<16x128xf32>, vector<16x128xf32>, vector<16x128xf32> -> vector<48x128xf32>
    %c0_4 = arith.constant 0 : index
    %c0_5 = arith.constant 0 : index
    %8 = vector.load %arg4[%c0_4, %c0_5] : memref<32x48xf32, #tpu.memory_space<vmem>>, vector<32x48xf32>
    %cst_6 = arith.constant dense<0.000000e+00> : vector<32x128xf32>
    %9 = tpu.matmul %8, %7, %cst_6 {dimension_numbers = #tpu.dot_dimension_numbers<[1], [0], [0], [1], [0, 0, 1, 1], [], []>} : vector<32x48xf32>, vector<48x128xf32>, vector<32x128xf32> -> vector<32x128xf32>
    %c0_7 = arith.constant 0 : index
    %c0_8 = arith.constant 0 : index
    %10 = vector.load %arg5[%c0_7, %c0_8] : memref<1x128xf32, #tpu.memory_space<vmem>>, vector<1x128xf32>
    %11 = vector.broadcast %10 : vector<1x128xf32> to vector<32x128xf32>
    %12 = arith.addf %9, %11 : vector<32x128xf32>
    %c0_9 = arith.constant 0 : index
    %c0_10 = arith.constant 0 : index
    %c0_11 = arith.constant 0 : index
    %13 = vector.load %arg6[%c0_9, %c0_10, %c0_11] : memref<1x32x128xf32, #tpu.memory_space<vmem>>, vector<1x32x128xf32>
    %14 = vector.shape_cast %13 : vector<1x32x128xf32> to vector<32x128xf32>
    %15 = vector.shape_cast %12 : vector<32x128xf32> to vector<1x32x128xf32>
    tpu.vector_store %arg6[%c0_9, %c0_10, %c0_11], %15 {strides = array<i32>} : memref<1x32x128xf32, #tpu.memory_space<vmem>>, vector<1x32x128xf32>,
    return
  }
  func.func @transform_0(%arg0: i32, %arg1: i32) -> (i32, i32, i32) {
    %c0_i32 = arith.constant 0 : i32
    %c0_i32_0 = arith.constant 0 : i32
    %c0_i32_1 = arith.constant 0 : i32
    return %arg0, %c0_i32, %c0_i32_0 : i32, i32, i32
  }
  func.func @transform_1(%arg0: i32, %arg1: i32) -> (i32, i32) {
    %c0_i32 = arith.constant 0 : i32
    %c0_i32_0 = arith.constant 0 : i32
    %c0_i32_1 = arith.constant 0 : i32
    return %c0_i32, %c0_i32_0 : i32, i32
  }
  func.func @transform_2(%arg0: i32, %arg1: i32) -> (i32, i32) {
    %c0_i32 = arith.constant 0 : i32
    %c0_i32_0 = arith.constant 0 : i32
    return %arg1, %c0_i32 : i32, i32
  }
  func.func @transform_3(%arg0: i32, %arg1: i32) -> (i32, i32) {
    %c0_i32 = arith.constant 0 : i32
    %c0_i32_0 = arith.constant 0 : i32
    %c0_i32_1 = arith.constant 0 : i32
    return %c0_i32, %c0_i32_0 : i32, i32
  }
  func.func @transform_4(%arg0: i32, %arg1: i32) -> (i32, i32, i32) {
    %c0_i32 = arith.constant 0 : i32
    %c0_i32_0 = arith.constant 0 : i32
    return %arg0, %arg1, %c0_i32 : i32, i32, i32
  }
}

</mosaic_0001>

<llo_original>
// kernel: upsample_forward.1
$region0: #{upsample_forward.1}
  #allocation0 [shape = 'u32[]', space=smem, size = 0x4, offset = 0x4, fixed_abs, tag = 'smem constant byte address 0x4 - core index']
  #allocation1 [shape = 'u32[72,128]{1,0:T(1,128)}', space=vmem, size = 0x9000, scoped, tag = 'internal scratch']
  %s0 = inlined_call_operand.vmem [shape: f32[2,16,64], index: 0, kind: input, shape index: {}]
  %s1 = inlined_call_operand.vmem [shape: f32[64,384], index: 1, kind: input, shape index: {}]
  %s2 = inlined_call_operand.vmem [shape: f32[32,48], index: 2, kind: input, shape index: {}]
  %s3 = inlined_call_operand.vmem [shape: f32[1,128], index: 3, kind: input, shape index: {}]
  %s4 = inlined_call_operand.vmem [shape: f32[2,32,128], index: 4, kind: output, shape index: {}]
  %s5 = sld [smem:[#allocation0]]
  $region49: #{upsample_forward.1} parent=0
    _
  %s7 = ssub.s32 1, %s5
  %s8 = scalar_select 0, %s7, %s5
  loop: start=0, step=1, limit=4
  $region2: #{upsample_forward.1} parent=0 // loop_pre_header
    _
  $region3: #{upsample_forward.1} parent=0 // loop_header
    %s10 = sphi 0, %s14
    %p11 = scmp.ge.s32.totalorder %s10, 4
    %s17 = sphi 0, %s29
    %s18 = sphi 0, %s25
    %s19 = sphi 0, %s17
    %s20 = sphi 0, %s18
    %s21 = sphi 0, %s19
    %s22 = sphi 0, %s20
    %s32 = sphi 0, %s34
    %s35 = sphi 0, %s32
    %s36 = sphi 0, %s35
    %s52 = sphi 0, %s36
    %s56 = sphi 0, %s56
    %s58 = sphi 0, %s56
    %s59 = sphi 0, %s58
    %s73 = sphi 0, %s59
    %s79 = sphi 0, %s81
    %s82 = sphi 0, %s79
    %s83 = sphi 0, %s82
    %s99 = sphi 0, %s83
    %s103 = sphi 0, %s103
    %s105 = sphi 0, %s103
    %s106 = sphi 0, %s105
    %s120 = sphi 0, %s106
    %s128 = sphi 0, %s130
    %s131 = sphi 0, %s128
    %s132 = sphi 0, %s131
    %s148 = sphi 0, %s132
  $region4: #{upsample_forward.1} parent=0 // loop_header_branch
    %13 = sbr.rel (%p11) target = $region8
  $region5: #{upsample_forward.1} parent=0 // loop_body
    %s15 = ssub.s32 %s10, 1
    %s16 = ssub.s32 %s10, 2
    %s23 = sadd.s32 1, %s18
    %p24 = scmp.ge.s32.totalorder %s23, 1
    %s25 = scalar_select %p24, 0, %s23
    %s26 = sadd.s32 1, %s17
    %s27 = scalar_select %p24, %s26, %s17
    %p28 = scmp.ge.s32.totalorder %s27, 2
    %s29 = scalar_select %p28, 0, %s27
    %s30 = ssub.s32 %s17, %s29
    %p31 = scmp.eq.s32.totalorder %s30, 0
    %s33 = sadd.s32 %s32, 1
    %s34 = scalar_select %p31, %s32, %s33
    %p37 = pneg %p31
    %p38 = scmp.eq.s32.totalorder %s10, 1
    %p39 = por %p37, %p38
    %p40 = scmp.ne.s32.totalorder %s32, %s35
    %p41 = scmp.eq.s32.totalorder %s10, 0
    %p42 = por %p40, %p41
    %p43 = scmp.ne.s32.totalorder %s32, %s35
    %p44 = scmp.eq.s32.totalorder %s15, 1
    %p45 = por %p43, %p44
    %p46 = scmp.ne.s32.totalorder %s35, %s36
    %p47 = scmp.eq.s32.totalorder %s15, 0
    %p48 = por %p46, %p47
    %p49 = scmp.ne.s32.totalorder %s35, %s36
    %p50 = scmp.eq.s32.totalorder %s16, 1
    %p51 = por %p49, %p50
    %p53 = scmp.ne.s32.totalorder %s36, %s52
    %p54 = scmp.eq.s32.totalorder %s16, 0
    %p55 = por %p53, %p54
    %s57 = sadd.s32 %s56, 1
    %p60 = scmp.eq.s32.totalorder %s10, 1
    %p61 = scmp.ne.s32.totalorder %s56, %s58
    %p62 = scmp.eq.s32.totalorder %s10, 0
    %p63 = por %p61, %p62
    %p64 = scmp.ne.s32.totalorder %s56, %s58
    %p65 = scmp.eq.s32.totalorder %s15, 1
    %p66 = por %p64, %p65
    %p67 = scmp.ne.s32.totalorder %s58, %s59
    %p68 = scmp.eq.s32.totalorder %s15, 0
    %p69 = por %p67, %p68
    %p70 = scmp.ne.s32.totalorder %s58, %s59
    %p71 = scmp.eq.s32.totalorder %s16, 1
    %p72 = por %p70, %p71
    %p74 = scmp.ne.s32.totalorder %s59, %s73
    %p75 = scmp.eq.s32.totalorder %s16, 0
    %p76 = por %p74, %p75
    %s77 = ssub.s32 %s18, %s25
    %p78 = scmp.eq.s32.totalorder %s77, 0
    %s80 = sadd.s32 %s79, 1
    %s81 = scalar_select %p78, %s79, %s80
    %p84 = pneg %p78
    %p85 = scmp.eq.s32.totalorder %s10, 1
    %p86 = por %p84, %p85
    %p87 = scmp.ne.s32.totalorder %s79, %s82
    %p88 = scmp.eq.s32.totalorder %s10, 0
    %p89 = por %p87, %p88
    %p90 = scmp.ne.s32.totalorder %s79, %s82
    %p91 = scmp.eq.s32.totalorder %s15, 1
    %p92 = por %p90, %p91
    %p93 = scmp.ne.s32.totalorder %s82, %s83
    %p94 = scmp.eq.s32.totalorder %s15, 0
    %p95 = por %p93, %p94
    %p96 = scmp.ne.s32.totalorder %s82, %s83
    %p97 = scmp.eq.s32.totalorder %s16, 1
    %p98 = por %p96, %p97
    %p100 = scmp.ne.s32.totalorder %s83, %s99
    %p101 = scmp.eq.s32.totalorder %s16, 0
    %p102 = por %p100, %p101
    %s104 = sadd.s32 %s103, 1
    %p107 = scmp.eq.s32.totalorder %s10, 1
    %p108 = scmp.ne.s32.totalorder %s103, %s105
    %p109 = scmp.eq.s32.totalorder %s10, 0
    %p110 = por %p108, %p109
    %p111 = scmp.ne.s32.totalorder %s103, %s105
    %p112 = scmp.eq.s32.totalorder %s15, 1
    %p113 = por %p111, %p112
    %p114 = scmp.ne.s32.totalorder %s105, %s106
    %p115 = scmp.eq.s32.totalorder %s15, 0
    %p116 = por %p114, %p115
    %p117 = scmp.ne.s32.totalorder %s105, %s106
    %p118 = scmp.eq.s32.totalorder %s16, 1
    %p119 = por %p117, %p118
    %p121 = scmp.ne.s32.totalorder %s106, %s120
    %p122 = scmp.eq.s32.totalorder %s16, 0
    %p123 = por %p121, %p122
    %s124 = ssub.s32 %s17, %s29
    %s125 = ssub.s32 %s18, %s25
    %s126 = sor.u32 %s124, %s125
    %p127 = scmp.eq.s32.totalorder %s126, 0
    %s129 = sadd.s32 %s128, 1
    %s130 = scalar_select %p127, %s128, %s129
    %p133 = pneg %p127
    %p134 = scmp.eq.s32.totalorder %s10, 1
    %p135 = por %p133, %p134
    %p136 = scmp.ne.s32.totalorder %s128, %s131
    %p137 = scmp.eq.s32.totalorder %s10, 0
    %p138 = por %p136, %p137
    %p139 = scmp.ne.s32.totalorder %s128, %s131
    %p140 = scmp.eq.s32.totalorder %s15, 1
    %p141 = por %p139, %p140
    %p142 = scmp.ne.s32.totalorder %s131, %s132
    %p143 = scmp.eq.s32.totalorder %s15, 0
    %p144 = por %p142, %p143
    %p145 = scmp.ne.s32.totalorder %s131, %s132
    %p146 = scmp.eq.s32.totalorder %s16, 1
    %p147 = por %p145, %p146
    %p149 = scmp.ne.s32.totalorder %s132, %s148
    %p150 = scmp.eq.s32.totalorder %s16, 0
    %p151 = por %p149, %p150
    %p152 = scmp.le.s32.totalorder 1, %s10
    %p153 = scmp.lt.s32.totalorder %s10, 3
    %p154 = pnand %p152, %p153
    %p155 = pneg %p154
    // Predicated region
    $region9: #{upsample_forward.1} parent=5 // pred_check
      _
    $region10: #{upsample_forward.1} parent=5 // pred_check_branch
      %157 = sbr.rel (%p154) target = $region12
    $region11: #{upsample_forward.1} parent=5 // pred_region
      %s158 = ssub.s32 %s10, 1
      // Predicated region
      $region13: #{upsample_forward.1} parent=11 // pred_check
        %p159 = pneg %p69
      $region14: #{upsample_forward.1} parent=11 // pred_check_branch
        %161 = sbr.rel (%p159) target = $region16
      $region15: #{upsample_forward.1} parent=11 // pred_region
        _
      $region16: #{upsample_forward.1} parent=11 // pred_fallthru
        _
      // Predicated region
      $region17: #{upsample_forward.1} parent=11 // pred_check
        %p162 = pneg %p95
      $region18: #{upsample_forward.1} parent=11 // pred_check_branch
        %164 = sbr.rel (%p162) target = $region20
      $region19: #{upsample_forward.1} parent=11 // pred_region
        %s165 = smul.u32 4, %s20
        %p166 = scmp.lt.s32.totalorder %s165, 3
        %s167 = scalar_select %p166, %s165, 3
        %s168 = smul.addr %s167, 8
        %s169 = scalar_lea.vmem %s2, %s168
        %s170 = smul.u32 4, %s20
      $region20: #{upsample_forward.1} parent=11 // pred_fallthru
        _
      // Predicated region
      $region21: #{upsample_forward.1} parent=11 // pred_check
        %p171 = pneg %p116
      $region22: #{upsample_forward.1} parent=11 // pred_check_branch
        %173 = sbr.rel (%p171) target = $region24
      $region23: #{upsample_forward.1} parent=11 // pred_region
        _
      $region24: #{upsample_forward.1} parent=11 // pred_fallthru
        _
    $region12: #{upsample_forward.1} parent=5 // pred_fallthru
      _
    %p174 = scmp.lt.s32.totalorder %s10, 2
    // Predicated region
    $region25: #{upsample_forward.1} parent=5 // pred_check
      %p175 = pneg %p174
    $region26: #{upsample_forward.1} parent=5 // pred_check_branch
      %177 = sbr.rel (%p175) target = $region28
    $region27: #{upsample_forward.1} parent=5 // pred_region
      // Predicated region
      $region29: #{upsample_forward.1} parent=27 // pred_check
        %p178 = pneg %p42
      $region30: #{upsample_forward.1} parent=27 // pred_check_branch
        %180 = sbr.rel (%p178) target = $region32
      $region31: #{upsample_forward.1} parent=27 // pred_region
        %p181 = scmp.lt.s32.totalorder %s17, 1
        %s182 = scalar_select %p181, %s17, 1
        %s183 = smul.addr %s182, 2
        %s184 = smul.addr %s183, 8
        %s185 = scalar_lea.vmem %s0, %s184
      $region32: #{upsample_forward.1} parent=27 // pred_fallthru
        _
    $region28: #{upsample_forward.1} parent=5 // pred_fallthru
      _
    %p186 = scmp.le.s32.totalorder 1, %s10
    %p187 = scmp.lt.s32.totalorder %s10, 3
    %p188 = pnand %p186, %p187
    %p189 = pneg %p188
    // Predicated region
    $region33: #{upsample_forward.1} parent=5 // pred_check
      _
    $region34: #{upsample_forward.1} parent=5 // pred_check_branch
      %191 = sbr.rel (%p188) target = $region36
    $region35: #{upsample_forward.1} parent=5 // pred_region
      %s192 = ssub.s32 %s10, 1
      %p193 = scmp.lt.s32.totalorder %s19, 1
      %s194 = scalar_select %p193, %s19, 1
      %s195 = smul.addr %s194, 2
      %s196 = smul.addr %s195, 8
      %s197 = scalar_lea.vmem %s0, %s196
      %p198 = pneg %p48
      %p199 = pneg %p45
      %p200 = pneg %p69
      %p201 = pneg %p66
      %s202 = smul.u32 4, %s20
      %p203 = scmp.lt.s32.totalorder %s202, 3
      %s204 = scalar_select %p203, %s202, 3
      %s205 = smul.addr %s204, 8
      %s206 = scalar_lea.vmem %s2, %s205
      %p207 = pneg %p95
      %p208 = pneg %p92
      %p209 = pneg %p116
      %p210 = pneg %p113
      %p211 = pneg %p144
      %p212 = pneg %p141
      %s213 = smul.u32 4, %s20
      %p214 = scmp.lt.s32.totalorder %s19, 1
      %s215 = scalar_select %p214, %s19, 1
      %p216 = scmp.lt.s32.totalorder %s213, 3
      %s217 = scalar_select %p216, %s213, 3
      %s218 = smul.addr %s215, 4
      %s219 = sadd.s32 %s217, %s218
      %s220 = smul.addr %s219, 8
      %s221 = scalar_lea.vmem %s4, %s220
      %p222 = scmp.lt.s32.totalorder %s19, 1
      %s223 = scalar_select %p222, %s19, 1
      %s224 = smul.addr %s223, 2
      %s225 = smul.addr %s224, 8
      %s226 = scalar_lea.vmem %s0, %s225
      %s227 = smul.u32 4, %s20
      %p228 = scmp.lt.s32.totalorder %s227, 3
      %s229 = scalar_select %p228, %s227, 3
      %s230 = smul.addr %s229, 8
      %s231 = scalar_lea.vmem %s2, %s230
      %s232 = smul.u32 4, %s20
      %s233 = smul.u32 4, %s20
      %p234 = scmp.lt.s32.totalorder %s19, 1
      %s235 = scalar_select %p234, %s19, 1
      %p236 = scmp.lt.s32.totalorder %s233, 3
      %s237 = scalar_select %p236, %s233, 3
      %s238 = smul.addr %s235, 4
      %s239 = sadd.s32 %s237, %s238
      %s240 = smul.addr %s239, 8
      %s241 = scalar_lea.vmem %s4, %s240
      %s242 = smul.u32 4, %s20
      %v243 = vld [vmem:[%s226] sm:$0xff]
      %v244 = vld [vmem:[%s226 + $0x8] sm:$0xff]
      %v245 = vld [vmem:[%s1] sm:$0xff]
      %v246 = vld [vmem:[%s1 + $0x8] sm:$0xff]
      %v247 = vld [vmem:[%s1 + $0x10] sm:$0xff]
      %v248 = vld [vmem:[%s1 + $0x18] sm:$0xff]
      %v249 = vld [vmem:[%s1 + $0x20] sm:$0xff]
      %v250 = vld [vmem:[%s1 + $0x28] sm:$0xff]
      %v251 = vld [vmem:[%s1 + $0x30] sm:$0xff]
      %v252 = vld [vmem:[%s1 + $0x38] sm:$0xff]
      %v253 = vld [vmem:[%s1 + $0x40] sm:$0xff]
      %v254 = vld [vmem:[%s1 + $0x48] sm:$0xff]
      %v255 = vld [vmem:[%s1 + $0x50] sm:$0xff]
      %v256 = vld [vmem:[%s1 + $0x58] sm:$0xff]
      %v257 = vld [vmem:[%s1 + $0x60] sm:$0xff]
      %v258 = vld [vmem:[%s1 + $0x68] sm:$0xff]
      %v259 = vld [vmem:[%s1 + $0x70] sm:$0xff]
      %v260 = vld [vmem:[%s1 + $0x78] sm:$0xff]
      %v261 = vld [vmem:[%s1 + $0x80] sm:$0xff]
      %v262 = vld [vmem:[%s1 + $0x88] sm:$0xff]
      %v263 = vld [vmem:[%s1 + $0x90] sm:$0xff]
      %v264 = vld [vmem:[%s1 + $0x98] sm:$0xff]
      %v265 = vld [vmem:[%s1 + $0xa0] sm:$0xff]
      %v266 = vld [vmem:[%s1 + $0xa8] sm:$0xff]
      %v267 = vld [vmem:[%s1 + $0xb0] sm:$0xff]
      %v268 = vld [vmem:[%s1 + $0xb8] sm:$0xff]
      %vm269 = vcmask 523264
      %v271 = vsel %vm269, %v243, 0
      %v274 = vsel %vm269, %v244, 0
      %276 = vmatpush.msra.mxu0 0.0
      %277 = vmatpush.msra.mxu0 0.0
      %278 = vmatpush.msra.mxu0 0.0
      %279 = vmatpush.msra.mxu0 0.0
      %280 = vmatpush.msra.mxu0 0.0
      %281 = vmatpush.msra.mxu0 0.0
      %282 = vmatpush.msra.mxu0 0.0
      %283 = vmatpush.msra.mxu0 0.0
      %284 = vmatpush.msra.mxu0 %v266
      %285 = vmatpush.msra.mxu0 %v263
      %286 = vmatpush.msra.mxu0 %v260
      %287 = vmatpush.msra.mxu0 %v257
      %288 = vmatpush.msra.mxu0 %v254
      %289 = vmatpush.msra.mxu0 %v251
      %290 = vmatpush.msra.mxu0 %v248
      %291 = vmatpush.msra.mxu0 %v245
      %292 = vmatmul.f32.gmra.mxu0 %v271
      %v293 = vpop.f32.mrf.mxu0
      %v294 = vadd.f32 0.0, %v293
      %295 = vmatmul.f32.gmra.mxu0 %v274
      %v296 = vpop.f32.mrf.mxu0
      %v297 = vadd.f32 0.0, %v296
      %298 = vdwg.mxu0
      %299 = vmatpush.msra.mxu0 0.0
      %300 = vmatpush.msra.mxu0 0.0
      %301 = vmatpush.msra.mxu0 0.0
      %302 = vmatpush.msra.mxu0 0.0
      %303 = vmatpush.msra.mxu0 0.0
      %304 = vmatpush.msra.mxu0 0.0
      %305 = vmatpush.msra.mxu0 0.0
      %306 = vmatpush.msra.mxu0 0.0
      %307 = vmatpush.msra.mxu0 %v267
      %308 = vmatpush.msra.mxu0 %v264
      %309 = vmatpush.msra.mxu0 %v261
      %310 = vmatpush.msra.mxu0 %v258
      %311 = vmatpush.msra.mxu0 %v255
      %312 = vmatpush.msra.mxu0 %v252
      %313 = vmatpush.msra.mxu0 %v249
      %314 = vmatpush.msra.mxu0 %v246
      %315 = vmatmul.f32.gmra.mxu0 %v271
      %v316 = vpop.f32.mrf.mxu0
      %v317 = vadd.f32 0.0, %v316
      %318 = vmatmul.f32.gmra.mxu0 %v274
      %v319 = vpop.f32.mrf.mxu0
      %v320 = vadd.f32 0.0, %v319
      %321 = vdwg.mxu0
      %322 = vmatpush.msra.mxu0 0.0
      %323 = vmatpush.msra.mxu0 0.0
      %324 = vmatpush.msra.mxu0 0.0
      %325 = vmatpush.msra.mxu0 0.0
      %326 = vmatpush.msra.mxu0 0.0
      %327 = vmatpush.msra.mxu0 0.0
      %328 = vmatpush.msra.mxu0 0.0
      %329 = vmatpush.msra.mxu0 0.0
      %330 = vmatpush.msra.mxu0 %v268
      %331 = vmatpush.msra.mxu0 %v265
      %332 = vmatpush.msra.mxu0 %v262
      %333 = vmatpush.msra.mxu0 %v259
      %334 = vmatpush.msra.mxu0 %v256
      %335 = vmatpush.msra.mxu0 %v253
      %336 = vmatpush.msra.mxu0 %v250
      %337 = vmatpush.msra.mxu0 %v247
      %338 = vmatmul.f32.gmra.mxu0 %v271
      %v339 = vpop.f32.mrf.mxu0
      %v340 = vadd.f32 0.0, %v339
      %341 = vmatmul.f32.gmra.mxu0 %v274
      %v342 = vpop.f32.mrf.mxu0
      %v343 = vadd.f32 0.0, %v342
      %344 = vdwg.mxu0
      %v345 = vld [vmem:[%s231] sm:$0xff]
      %v346 = vld [vmem:[%s231 + $0x8] sm:$0xff]
      %v347 = vld [vmem:[%s231 + $0x10] sm:$0xff]
      %v348 = vld [vmem:[%s231 + $0x18] sm:$0xff]
      %v349 = vld [vmem:[%s3] sm:$0x1]
      %v351 = vperm.slane %v349, 0
      %vm353 = vcmask 392192
      %v355 = vsel %vm353, %v345, 0
      %v358 = vsel %vm353, %v346, 0
      %v361 = vsel %vm353, %v347, 0
      %v364 = vsel %vm353, %v348, 0
      %366 = vmatpush.msra.mxu0 0.0
      %367 = vmatpush.msra.mxu0 0.0
      %368 = vmatpush.msra.mxu0 0.0
      %369 = vmatpush.msra.mxu0 0.0
      %370 = vmatpush.msra.mxu0 0.0
      %371 = vmatpush.msra.mxu0 0.0
      %372 = vmatpush.msra.mxu0 0.0
      %373 = vmatpush.msra.mxu0 0.0
      %374 = vmatpush.msra.mxu0 0.0
      %375 = vmatpush.msra.mxu0 0.0
      %376 = vmatpush.msra.mxu0 %v343
      %377 = vmatpush.msra.mxu0 %v340
      %378 = vmatpush.msra.mxu0 %v320
      %379 = vmatpush.msra.mxu0 %v317
      %380 = vmatpush.msra.mxu0 %v297
      %381 = vmatpush.msra.mxu0 %v294
      %382 = vmatmul.f32.gmra.mxu0 %v355
      %v383 = vpop.f32.mrf.mxu0
      %v384 = vadd.f32 %v351, %v383
      %385 = vmatmul.f32.gmra.mxu0 %v358
      %v386 = vpop.f32.mrf.mxu0
      %v387 = vadd.f32 %v351, %v386
      %388 = vmatmul.f32.gmra.mxu0 %v361
      %v389 = vpop.f32.mrf.mxu0
      %v390 = vadd.f32 %v351, %v389
      %391 = vmatmul.f32.gmra.mxu0 %v364
      %v392 = vpop.f32.mrf.mxu0
      %v393 = vadd.f32 %v351, %v392
      %394 = vdwg.mxu0
      %395 = vst [vmem:[%s241] sm:$0xff] %v384
      %396 = vst [vmem:[%s241 + $0x8] sm:$0xff] %v387
      %397 = vst [vmem:[%s241 + $0x10] sm:$0xff] %v390
      %398 = vst [vmem:[%s241 + $0x18] sm:$0xff] %v393
      %s399 = smul.u32 4, %s20
      %p400 = scmp.lt.s32.totalorder %s19, 1
      %s401 = scalar_select %p400, %s19, 1
      %p402 = scmp.lt.s32.totalorder %s399, 3
      %s403 = scalar_select %p402, %s399, 3
      %s404 = smul.addr %s401, 4
      %s405 = sadd.s32 %s403, %s404
      %s406 = smul.addr %s405, 8
      %s407 = scalar_lea.vmem %s4, %s406
      // Predicated region
      $region37: #{upsample_forward.1} parent=35 // pred_check
        %p408 = pneg %p141
      $region38: #{upsample_forward.1} parent=35 // pred_check_branch
        %410 = sbr.rel (%p408) target = $region40
      $region39: #{upsample_forward.1} parent=35 // pred_region
        %s411 = smul.u32 4, %s20
      $region40: #{upsample_forward.1} parent=35 // pred_fallthru
        _
    $region36: #{upsample_forward.1} parent=5 // pred_fallthru
      _
    %p412 = scmp.le.s32.totalorder 2, %s10
    // Predicated region
    $region41: #{upsample_forward.1} parent=5 // pred_check
      %p413 = pneg %p412
    $region42: #{upsample_forward.1} parent=5 // pred_check_branch
      %415 = sbr.rel (%p413) target = $region44
    $region43: #{upsample_forward.1} parent=5 // pred_region
      %s416 = ssub.s32 %s10, 2
      // Predicated region
      $region45: #{upsample_forward.1} parent=43 // pred_check
        %p417 = pneg %p147
      $region46: #{upsample_forward.1} parent=43 // pred_check_branch
        %419 = sbr.rel (%p417) target = $region48
      $region47: #{upsample_forward.1} parent=43 // pred_region
        %s420 = smul.u32 4, %s22
        %p421 = scmp.lt.s32.totalorder %s21, 1
        %s422 = scalar_select %p421, %s21, 1
        %p423 = scmp.lt.s32.totalorder %s420, 3
        %s424 = scalar_select %p423, %s420, 3
        %s425 = smul.addr %s422, 4
        %s426 = sadd.s32 %s424, %s425
        %s427 = smul.addr %s426, 8
        %s428 = scalar_lea.vmem %s4, %s427
      $region48: #{upsample_forward.1} parent=43 // pred_fallthru
        _
    $region44: #{upsample_forward.1} parent=5 // pred_fallthru
      _
  $region6: #{upsample_forward.1} parent=0 // loop_footer
    %s14 = sadd.s32 1, %s10
  $region7: #{upsample_forward.1} parent=0 // loop_footer_branch
    %9 = sbr.rel target = $region3
  $region8: #{upsample_forward.1} parent=0 // loop_exit
    _

</llo_original>
